<compile_context>
chip_gen: v7x
topology: tpu7x:2x2x1
jax: 0.10.0
libtpu: 0.0.40
codegen_flags: <defaults>
</compile_context>

<pallas_src>
from functools import partial

import jax
import jax.numpy as jnp
from jax.experimental import pallas as pl
from jax.experimental.pallas import tpu as pltpu


# --------------------------------------------------------------------------
# hardware introspection
# --------------------------------------------------------------------------
def _tpu_generation_info():
    """(vmem_capacity_bytes, num_tensorcores_per_chip, has_bf16_eup)."""
    try:
        vmem_cap = int(pltpu.get_tpu_info().vmem_capacity_bytes)
    except Exception:
        vmem_cap = 128 * 1024 * 1024
    try:
        kind = jax.devices()[0].device_kind.lower()
    except Exception:
        kind = ""
    is_v7 = any(tag in kind for tag in ("v7", "tpu7", "7x"))
    num_tc = 2 if is_v7 else 1
    has_bf16_eup = ("v6" in kind) or is_v7
    return vmem_cap, num_tc, has_bf16_eup


# --------------------------------------------------------------------------
# RotaryEmbedding.forward: build (freqs, xpos_scale) tables for seq_len
# --------------------------------------------------------------------------
def _rotary_tables_kernel(inv_freq_ref, scale_vec_ref, freqs_ref, scale_ref,
                          *, seq_len, scale_base):
    n, d = freqs_ref.shape
    half = d // 2
    t = jax.lax.broadcasted_iota(jnp.int32, (n, half), 0).astype(jnp.float32)

    inv_freq = inv_freq_ref[...]                      # (1, half)
    freqs_half = t * inv_freq                         # (n, half)
    freqs_ref[...] = jnp.concatenate([freqs_half, freqs_half], axis=-1)

    power = (t - float(seq_len // 2)) * (1.0 / float(scale_base))  # (n, half)
    base = scale_vec_ref[...]                         # (1, half), all > 0
    scale_half = jnp.exp(power * jnp.log(base))       # base ** power
    scale_ref[...] = jnp.concatenate([scale_half, scale_half], axis=-1)


class PallasRotaryEmbedding:
    """Mirror of the PyTorch RotaryEmbedding module (with buffer memoization)."""

    def __init__(self, dim, scale_base=512, theta=10000):
        assert dim % 2 == 0
        self.dim = dim
        self.scale_base = float(scale_base)
        self.inv_freq = 1.0 / (theta ** (jnp.arange(0, dim, 2,
                                                    dtype=jnp.float32) / dim))
        self.scale = (jnp.arange(0, dim, 2, dtype=jnp.float32)
                      + 0.4 * dim) / (1.4 * dim)
        self.cached_freqs = None
        self.cached_scales = None

    def __call__(self, seq_len):
        seq_len = int(seq_len)
        # mirror torch cached_freqs / cached_scales memoization
        if (self.cached_freqs is not None
                and self.cached_freqs.shape[0] >= seq_len):
            return (self.cached_freqs[:seq_len], self.cached_scales[:seq_len])

        half = self.dim // 2
        kernel = partial(_rotary_tables_kernel, seq_len=seq_len,
                         scale_base=self.scale_base)
        freqs, scale = pl.pallas_call(
            kernel,
            out_shape=(jax.ShapeDtypeStruct((seq_len, self.dim), jnp.float32),
                       jax.ShapeDtypeStruct((seq_len, self.dim), jnp.float32)),
        )(self.inv_freq.reshape(1, half), self.scale.reshape(1, half))

        self.cached_freqs = freqs
        self.cached_scales = scale
        return freqs, scale


# --------------------------------------------------------------------------
# flash-style attention kernel (rope + l2norm + online-softmax attention)
# --------------------------------------------------------------------------
def _flash_attention_kernel(*refs, causal, qk_rmsnorm, has_rotary, mxu_bf16,
                            exp_bf16, tq, tkv, scale):
    q_ref, k_ref, v_ref = refs[0], refs[1], refs[2]
    idx = 3
    if has_rotary:
        cq_ref, sq_ref, ck_ref, sk_ref = refs[idx:idx + 4]
        idx += 4
    if qk_rmsnorm:
        qs_ref, ks_ref = refs[idx], refs[idx + 1]
        idx += 2
    o_ref = refs[idx]
    m_scr, l_scr, acc_scr, qp_scr = refs[idx + 1:idx + 5]

    qi = pl.program_id(1)
    ki = pl.program_id(2)
    nk = pl.num_programs(2)

    mxu_dtype = jnp.bfloat16 if mxu_bf16 else jnp.float32
    dot_precision = None if mxu_bf16 else jax.lax.Precision.HIGHEST

    def _roll_half(x):
        d = x.shape[-1]
        if d % 128 == 0:
            return pltpu.roll(x, shift=d // 2, axis=-1)        # XLU rotate
        return jnp.concatenate([x[..., d // 2:], x[..., : d // 2]], axis=-1)

    def _l2norm(x):
        # F.normalize: x / max(||x||, 1e-12) == x * rsqrt(max(sumsq, 1e-24))
        return x * jax.lax.rsqrt(
            jnp.maximum(jnp.sum(x * x, axis=-1, keepdims=True), 1e-24))

    # -------------------- init + per-q-tile prologue (once per q tile) -----
    @pl.when(ki == 0)
    def _init():
        m_scr[...] = jnp.full_like(m_scr, -1e30)
        l_scr[...] = jnp.zeros_like(l_scr)
        acc_scr[...] = jnp.zeros_like(acc_scr)

        q = q_ref[...].astype(jnp.float32)                     # (G, TQ, D)
        if qk_rmsnorm:
            q = _l2norm(q) * qs_ref[...]
        if has_rotary:
            # sign-folded tables: cq = cos*s ; sq = sin*s*sign, so
            # roll-by-half(q) * sq == rotate_half(q) * sin * s
            q = q * cq_ref[...] + _roll_half(q) * sq_ref[...]
        q = q * scale                                          # fold softmax scale
        qp_scr[...] = q.astype(qp_scr.dtype)

    # -------------------- per-kv-tile online-softmax update ----------------
    def _compute():
        k = k_ref[...].astype(jnp.float32)                     # (G, TK, D)
        if qk_rmsnorm:
            k = _l2norm(k) * ks_ref[...]
        if has_rotary:
            k = k * ck_ref[...] + _roll_half(k) * sk_ref[...]
        km = k.astype(mxu_dtype)
        vm = v_ref[...].astype(mxu_dtype)
        qm = qp_scr[...]

        # NT contraction, f32 accumulation
        sim = jax.lax.dot_general(
            qm, km, dimension_numbers=(((2,), (2,)), ((0,), (0,))),
            precision=dot_precision,
            preferred_element_type=jnp.float32)                # (G, TQ, TK)

        if causal:
            row = qi * tq + jax.lax.broadcasted_iota(jnp.int32, (tq, tkv), 0)
            col = ki * tkv + jax.lax.broadcasted_iota(jnp.int32, (tq, tkv), 1)
            sim = jnp.where((col > row)[None, :, :], -1e30, sim)

        m_prev = m_scr[...]
        m_new = jnp.maximum(m_prev, jnp.max(sim, axis=-1, keepdims=True))
        alpha = jnp.exp(m_prev - m_new)
        x = sim - m_new
        if exp_bf16:
            # bf16 EUP (v6e/v7x): ~2x exp throughput; sums stay f32
            p = jnp.exp(x.astype(jnp.bfloat16))
            p_sum = jnp.sum(p.astype(jnp.float32), axis=-1, keepdims=True)
        else:
            p = jnp.exp(x)
            p_sum = jnp.sum(p, axis=-1, keepdims=True)

        l_scr[...] = alpha * l_scr[...] + p_sum
        acc_scr[...] = alpha * acc_scr[...] + jax.lax.dot_general(
            p.astype(mxu_dtype), vm,
            dimension_numbers=(((2,), (1,)), ((0,), (0,))),
            precision=dot_precision,
            preferred_element_type=jnp.float32)                # (G, TQ, D)
        m_scr[...] = m_new

    if causal:
        # skip kv tiles that are entirely above the diagonal for this q tile
        @pl.when(ki * tkv <= qi * tq + (tq - 1))
        def _():
            _compute()
    else:
        _compute()

    # -------------------- finalize --------------------
    @pl.when(ki == nk - 1)
    def _finalize():
        # approx reciprocal on the EUP; use exact division if training-grade
        # accuracy of the softmax denominator is required.
        inv_l = pl.reciprocal(l_scr[...], approx=True)
        o_ref[...] = (acc_scr[...] * inv_l).astype(o_ref.dtype)


# --------------------------------------------------------------------------
# tile / head-group planning (generation aware)
# --------------------------------------------------------------------------
def _divisor_tile(total, target):
    """Largest divisor of `total` <= target that is a multiple of 8
    (or `total` itself)."""
    for t in range(min(total, target), 0, -1):
        if total % t == 0 and (t % 8 == 0 or t == total):
            return t
    return total


def _plan_tiles(bh, n, d, itemsize, q_tile_target=None, kv_tile_target=None):
    vmem_cap, num_tc, has_bf16_eup = _tpu_generation_info()
    budget = max(8 << 20, int(vmem_cap * 0.45))   # headroom for compiler scratch

    # kv tile >= 256/512 keeps the attn@V contraction MXU-filled on v6e/v7x;
    # q tile a bit smaller since it also sizes the persistent scratch.
    tkv = _divisor_tile(n, kv_tile_target or 512)
    tq = _divisor_tile(n, q_tile_target or 256)

    def est_bytes(g):
        io_in = 2 * g * (tq + 2 * tkv) * d * itemsize     # dbl-buffered q, k, v
        io_out = 2 * g * tq * d * itemsize                # dbl-buffered output
        tables = 2 * 2 * (tq + tkv) * d * 4               # 4 rope tables, dbl-buf
        scratch = g * tq * (2 * d + 2) * 4 + g * tq * d * itemsize
        temps = 4 * g * tq * tkv * 4                      # sim / p / select temps
        return io_in + io_out + tables + scratch + temps

    # if even one head-group does not fit, shrink kv (then q) tiles
    for _ in range(32):
        if est_bytes(1) <= budget:
            break
        prev = (tq, tkv)
        if tkv >= tq and tkv > 8:
            tkv = _divisor_tile(n, max(8, tkv // 2))
        elif tq > 8:
            tq = _divisor_tile(n, max(8, tq // 2))
        if (tq, tkv) == prev:
            break

    # largest head-group dividing BH that fits the VMEM budget
    g = bh
    while g > 1 and (bh % g != 0 or est_bytes(g) > budget):
        g -= 1

    if num_tc >= 2:
        # v7x megacore: prefer a parallel grid that splits evenly over 2 TCs
        for cand in range(g, 0, -1):
            if bh % cand:
                continue
            steps = (bh // cand) * max(1, n // tq)
            if steps >= 2 and steps % 2 == 0 and est_bytes(cand) <= budget:
                g = cand
                break

    vmem_limit = int(min(vmem_cap * 0.9, max(32 << 20, 2 * est_bytes(g))))
    return g, tq, tkv, vmem_limit, has_bf16_eup


# --------------------------------------------------------------------------
# attention wrapper (mirror of the PyTorch Attention forward, non-flash path)
# --------------------------------------------------------------------------
class PallasAttention:

    def __init__(self, dim_head, causal=False, qk_rmsnorm=False,
                 qk_rmsnorm_scale=8, mxu_bf16=True):
        self.dim_head = dim_head
        self.causal = causal
        self.qk_rmsnorm = qk_rmsnorm
        self.qk_rmsnorm_scale = qk_rmsnorm_scale
        self.mxu_bf16 = mxu_bf16
        if qk_rmsnorm:
            self.q_scale = jnp.ones((dim_head,), jnp.float32)
            self.k_scale = jnp.ones((dim_head,), jnp.float32)
        else:
            self.q_scale = None
            self.k_scale = None

    def __call__(self, q, k, v, mask=None, rotary_pos_emb=None,
                 xpos_scale=None, q_tile=None, kv_tile=None):
        # TODO(synk): key-padding `mask` argument not implemented (mask=None only)
        assert mask is None

        B, H, N, D = q.shape
        assert D == self.dim_head and D % 2 == 0
        assert k.shape == (B, H, N, D) and v.shape == (B, H, N, D)
        BH = B * H

        qf = q.reshape(BH, N, D)
        kf = k.reshape(BH, N, D)
        vf = v.reshape(BH, N, D)

        G, TQ, TK, vmem_limit, has_bf16_eup = _plan_tiles(
            BH, N, D, q.dtype.itemsize, q_tile, kv_tile)
        has_rotary = rotary_pos_emb is not None
        exp_bf16 = bool(self.mxu_bf16 and has_bf16_eup)
        # torch Attention: scale = qk_rmsnorm_scale when qk_rmsnorm else d**-0.5
        scale = (float(self.qk_rmsnorm_scale) if self.qk_rmsnorm
                 else float(D) ** -0.5)

        inputs = [qf, kf, vf]
        in_specs = [
            pl.BlockSpec((G, TQ, D), lambda g, qi, ki: (g, qi, 0)),
            pl.BlockSpec((G, TK, D), lambda g, qi, ki: (g, ki, 0)),
            pl.BlockSpec((G, TK, D), lambda g, qi, ki: (g, ki, 0)),
        ]

        if has_rotary:
            pos = jnp.asarray(rotary_pos_emb, jnp.float32)[-N:]          # (N, D)
            if xpos_scale is None:
                s = jnp.ones((), jnp.float32)
            else:
                s = jnp.asarray(xpos_scale, jnp.float32)
                if s.ndim >= 2:
                    s = s[-N:]                                           # (N, D)
            cosp, sinp = jnp.cos(pos), jnp.sin(pos)
            half = D // 2
            # roll-by-half * sign == rotate_half; fold the sign into sin tables
            sign = jnp.concatenate([-jnp.ones((half,), jnp.float32),
                                    jnp.ones((half,), jnp.float32)])
            cos_q = jnp.broadcast_to(cosp * s, (N, D)).astype(jnp.float32)
            sin_q = jnp.broadcast_to(sinp * s * sign, (N, D)).astype(jnp.float32)
            cos_k = jnp.broadcast_to(cosp / s, (N, D)).astype(jnp.float32)
            sin_k = jnp.broadcast_to(sinp / s * sign, (N, D)).astype(jnp.float32)
            inputs += [cos_q, sin_q, cos_k, sin_k]
            q_tbl_spec = pl.BlockSpec((TQ, D), lambda g, qi, ki: (qi, 0))
            k_tbl_spec = pl.BlockSpec((TK, D), lambda g, qi, ki: (ki, 0))
            in_specs += [q_tbl_spec, q_tbl_spec, k_tbl_spec, k_tbl_spec]

        if self.qk_rmsnorm:
            inputs += [self.q_scale.reshape(1, D), self.k_scale.reshape(1, D)]
            sc_spec = pl.BlockSpec((1, D), lambda g, qi, ki: (0, 0))
            in_specs += [sc_spec, sc_spec]

        mxu_dtype = jnp.bfloat16 if self.mxu_bf16 else jnp.float32
        kernel = partial(
            _flash_attention_kernel,
            causal=self.causal,
            qk_rmsnorm=self.qk_rmsnorm,
            has_rotary=has_rotary,
            mxu_bf16=self.mxu_bf16,
            exp_bf16=exp_bf16,
            tq=TQ,
            tkv=TK,
            scale=scale,
        )

        out = pl.pallas_call(
            kernel,
            out_shape=jax.ShapeDtypeStruct((BH, N, D), q.dtype),
            grid_spec=pltpu.PrefetchScalarGridSpec(
                num_scalar_prefetch=0,
                grid=(BH // G, N // TQ, N // TK),
                in_specs=in_specs,
                out_specs=pl.BlockSpec((G, TQ, D), lambda g, qi, ki: (g, qi, 0)),
                scratch_shapes=[
                    pltpu.VMEM((G, TQ, 1), jnp.float32),   # running max
                    pltpu.VMEM((G, TQ, 1), jnp.float32),   # running denom
                    pltpu.VMEM((G, TQ, D), jnp.float32),   # output accumulator
                    pltpu.VMEM((G, TQ, D), mxu_dtype),     # processed q tile
                ]),
            compiler_params=pltpu.CompilerParams(
                dimension_semantics=("parallel", "parallel", "arbitrary"),
                vmem_limit_bytes=int(vmem_limit)),
        )(*inputs)

        return out.reshape(B, H, N, D)


# --------------------------------------------------------------------------
# pure-JAX references
# --------------------------------------------------------------------------
def _rotate_half_ref(x):
    d = x.shape[-1]
    x1, x2 = x[..., : d // 2], x[..., d // 2:]
    return jnp.concatenate([-x2, x1], axis=-1)


def _attention_reference(q, k, v, q_scale, k_scale, pos, xpos_scale,
                         causal, qk_rmsnorm, scale):
    if qk_rmsnorm:
        def l2norm(t):
            return t / jnp.maximum(
                jnp.sqrt(jnp.sum(t * t, axis=-1, keepdims=True)), 1e-12)
        q = l2norm(q) * q_scale
        k = l2norm(k) * k_scale
    if pos is not None:
        s = xpos_scale if xpos_scale is not None else jnp.float32(1.0)
        cosp, sinp = jnp.cos(pos), jnp.sin(pos)
        q = q * cosp * s + _rotate_half_ref(q) * sinp * s
        k = k * cosp * (1.0 / s) + _rotate_half_ref(k) * sinp * (1.0 / s)
    sim = jnp.einsum('bhid,bhjd->bhij', q, k) * scale
    if causal:
        n = sim.shape[-1]
        cm = jnp.triu(jnp.ones((n, n), bool), 1)
        sim = jnp.where(cm, -jnp.finfo(sim.dtype).max, sim)
    attn = jax.nn.softmax(sim, axis=-1)
    return jnp.einsum('bhij,bhjd->bhid', attn, v)


if __name__ == "__main__":
    key = jax.random.PRNGKey(0)

    # ---------------- RotaryEmbedding.forward (the spec module) ----------------
    B, H, N, D = 2, 2, 8, 32
    rope = PallasRotaryEmbedding(D, scale_base=512, theta=10000)
    freqs, xpos = rope(N)
    freqs = jax.block_until_ready(freqs)
    xpos = jax.block_until_ready(xpos)

    t = jnp.arange(N, dtype=jnp.float32)
    f_ref = jnp.einsum('i,j->ij', t, rope.inv_freq)
    f_ref = jnp.concatenate([f_ref, f_ref], axis=-1)
    p_ref = (t - N // 2) / rope.scale_base
    s_ref = rope.scale[None, :] ** p_ref[:, None]
    s_ref = jnp.concatenate([s_ref, s_ref], axis=-1)
    assert freqs.shape == (N, D) and xpos.shape == (N, D)
    assert jnp.allclose(freqs, f_ref, atol=1e-5, rtol=1e-5)
    assert jnp.allclose(xpos, s_ref, atol=1e-5, rtol=1e-5)

    # memoized path (mirrors torch cached_freqs / cached_scales)
    freqs_c, xpos_c = rope(N)
    assert jnp.allclose(freqs_c, freqs) and jnp.allclose(xpos_c, xpos)

    # ------- attention consuming the tables (single-tile, rmsnorm, bf16) -------
    kq, kk, kv = jax.random.split(key, 3)
    q = jax.random.normal(kq, (B, H, N, D), jnp.float32)
    k = jax.random.normal(kk, (B, H, N, D), jnp.float32)
    v = jax.random.normal(kv, (B, H, N, D), jnp.float32)

    attn = PallasAttention(dim_head=D, causal=True, qk_rmsnorm=True,
                           qk_rmsnorm_scale=8, mxu_bf16=True)
    out = jax.block_until_ready(attn(q, k, v, rotary_pos_emb=freqs,
                                     xpos_scale=xpos))
    ref = _attention_reference(q, k, v, attn.q_scale, attn.k_scale,
                               f_ref, s_ref, causal=True, qk_rmsnorm=True,
                               scale=float(attn.qk_rmsnorm_scale))
    assert out.shape == (B, H, N, D)
    err = float(jnp.max(jnp.abs(out - ref)))
    # tolerance covers bf16 MXU entry + bf16 exp (v6e/v7x) + approx reciprocal
    assert jnp.allclose(out, ref, atol=4e-2, rtol=4e-2), err

    # -------- multi-tile flash path (online softmax + causal tile skip) --------
    B2, H2, N2, D2 = 1, 2, 32, 32
    k2q, k2k, k2v = jax.random.split(jax.random.PRNGKey(1), 3)
    q2 = jax.random.normal(k2q, (B2, H2, N2, D2), jnp.float32)
    k2 = jax.random.normal(k2k, (B2, H2, N2, D2), jnp.float32)
    v2 = jax.random.normal(k2v, (B2, H2, N2, D2), jnp.float32)
    rope2 = PallasRotaryEmbedding(D2)
    freqs2, xpos2 = rope2(N2)

    attn2 = PallasAttention(dim_head=D2, causal=True, qk_rmsnorm=False,
                            mxu_bf16=True)
    out2 = jax.block_until_ready(
        attn2(q2, k2, v2, rotary_pos_emb=freqs2, xpos_scale=xpos2,
              q_tile=8, kv_tile=8))
    ref2 = _attention_reference(q2, k2, v2, None, None, freqs2, xpos2,
                                causal=True, qk_rmsnorm=False,
                                scale=float(D2) ** -0.5)
    err2 = float(jnp.max(jnp.abs(out2 - ref2)))
    assert jnp.allclose(out2, ref2, atol=4e-2, rtol=4e-2), err2

    # --------------- f32 path, no rotary / no rmsnorm, non-causal --------------
    B3, H3, N3, D3 = 1, 1, 16, 32
    k3q, k3k, k3v = jax.random.split(jax.random.PRNGKey(2), 3)
    q3 = jax.random.normal(k3q, (B3, H3, N3, D3), jnp.float32)
    k3 = jax.random.normal(k3k, (B3, H3, N3, D3), jnp.float32)
    v3 = jax.random.normal(k3v, (B3, H3, N3, D3), jnp.float32)
    attn3 = PallasAttention(dim_head=D3, causal=False, qk_rmsnorm=False,
                            mxu_bf16=False)
    out3 = jax.block_until_ready(attn3(q3, k3, v3))
    ref3 = _attention_reference(q3, k3, v3, None, None, None, None,
                                causal=False, qk_rmsnorm=False,
                                scale=float(D3) ** -0.5)
    err3 = float(jnp.max(jnp.abs(out3 - ref3)))
    assert jnp.allclose(out3, ref3, atol=1e-2, rtol=1e-2), err3

    print("KERNEL_OK")
</pallas_src>

<mosaic_0001>
module attributes {stable_mosaic.version = 11 : i64} {
  func.func @_rotary_tables_kernel(%arg0: memref<1x16xf32, #tpu.memory_space<vmem>>, %arg1: memref<1x16xf32, #tpu.memory_space<vmem>>, %arg2: memref<8x32xf32, #tpu.memory_space<vmem>>, %arg3: memref<8x32xf32, #tpu.memory_space<vmem>>) attributes {dimension_semantics = [], scalar_prefetch = 0 : i64, scratch_operands = 0 : i64, tpu.core_type = #tpu.core_type<tc>} {
    %0 = tpu.iota {dimensions = array<i32: 0>} : vector<8x16xi32>
    %1 = arith.sitofp %0 : vector<8x16xi32> to vector<8x16xf32>
    %c0 = arith.constant 0 : index
    %c0_0 = arith.constant 0 : index
    %2 = vector.load %arg0[%c0, %c0_0] : memref<1x16xf32, #tpu.memory_space<vmem>>, vector<1x16xf32>
    %3 = vector.broadcast %2 : vector<1x16xf32> to vector<8x16xf32>
    %4 = arith.mulf %1, %3 : vector<8x16xf32>
    %5 = tpu.concatenate %4, %4 in 1 : vector<8x16xf32>, vector<8x16xf32> -> vector<8x32xf32>
    %c0_1 = arith.constant 0 : index
    %c0_2 = arith.constant 0 : index
    %6 = vector.load %arg2[%c0_1, %c0_2] : memref<8x32xf32, #tpu.memory_space<vmem>>, vector<8x32xf32>
    tpu.vector_store %arg2[%c0_1, %c0_2], %5 {strides = array<i32>} : memref<8x32xf32, #tpu.memory_space<vmem>>, vector<8x32xf32>,
    %cst = arith.constant 4.000000e+00 : f32
    %7 = vector.broadcast %cst : f32 to vector<8x16xf32>
    %8 = arith.subf %1, %7 : vector<8x16xf32>
    %cst_3 = arith.constant 0.001953125 : f32
    %9 = vector.broadcast %cst_3 : f32 to vector<8x16xf32>
    %10 = arith.mulf %8, %9 : vector<8x16xf32>
    %c0_4 = arith.constant 0 : index
    %c0_5 = arith.constant 0 : index
    %11 = vector.load %arg1[%c0_4, %c0_5] : memref<1x16xf32, #tpu.memory_space<vmem>>, vector<1x16xf32>
    %12 = math.log %11 : vector<1x16xf32>
    %13 = vector.broadcast %12 : vector<1x16xf32> to vector<8x16xf32>
    %14 = arith.mulf %10, %13 : vector<8x16xf32>
    %15 = math.exp %14 : vector<8x16xf32>
    %16 = tpu.concatenate %15, %15 in 1 : vector<8x16xf32>, vector<8x16xf32> -> vector<8x32xf32>
    %c0_6 = arith.constant 0 : index
    %c0_7 = arith.constant 0 : index
    %17 = vector.load %arg3[%c0_6, %c0_7] : memref<8x32xf32, #tpu.memory_space<vmem>>, vector<8x32xf32>
    tpu.vector_store %arg3[%c0_6, %c0_7], %16 {strides = array<i32>} : memref<8x32xf32, #tpu.memory_space<vmem>>, vector<8x32xf32>,
    return
  }
}

</mosaic_0001>

<llo_original>
// kernel: tpu_custom_call.1
$region0: #{tpu_custom_call.1}
  #allocation0 [shape = 'u32[]', space=smem, size = 0x4, offset = 0x4, fixed_abs, tag = 'smem constant byte address 0x4 - core index']
  #allocation1 [shape = 'u32[144,128]{1,0:T(1,128)}', space=vmem, size = 0x12000, scoped, tag = 'internal scratch']
  %s0 = inlined_call_operand.hbm [shape: f32[1,16], index: 0, kind: input, shape index: {}]
  %s1 = inlined_call_operand.vmem [shape: f32[1,16], index: 1, kind: input, shape index: {}]
  %s2 = inlined_call_operand.hbm [shape: f32[8,32], index: 2, kind: output, shape index: {0}]
  %s3 = inlined_call_operand.hbm [shape: f32[8,32], index: 3, kind: output, shape index: {1}]
  %4 = xla_tuple %s2, %s3
  %s5 = sld [smem:[#allocation0]]
  $region30: #{tpu_custom_call.1} parent=0
    _
  %s7 = ssub.s32 1, %s5
  %s8 = scalar_select 0, %s7, %s5
  $region1: #{tpu_custom_call.1} parent=0
    #allocation2 [shape = 'u8[512]{0}', space=vmem, size = 0x400, scoped, tag = 'input window, operand 0, single buffered']
    #allocation3 [shape = 's32[1]{0}', space=sflag, size = 0x4, scoped, tag = 'scoped memory for tpu_custom_call.1']
    #allocation4 [shape = 's32[1]{0}', space=sflag, size = 0x4, scoped, tag = 'scoped memory for tpu_custom_call.1']
    #allocation5 [shape = 'u8[4096]{0}', space=vmem, size = 0x1000, scoped, tag = 'output window, operand 0, single buffered']
    #allocation6 [shape = 'u8[4096]{0}', space=vmem, size = 0x1000, scoped, tag = 'output window, operand 1, single buffered']
    #allocation7 [shape = 's32[1]{0}', space=sflag, size = 0x4, scoped, tag = 'scoped memory for tpu_custom_call.1']
    %9 = vsyncpa [#allocation3], 0
    %10 = vsyncpa [#allocation4], 0
    %11 = vsyncpa [#allocation7], 0
    // Predicated region
    $region2: #{tpu_custom_call.1} parent=1 // pred_check
      _
    $region3: #{tpu_custom_call.1} parent=1 // pred_check_branch
      %13 = sbr.rel (0) target = $region5
    $region4: #{tpu_custom_call.1} parent=1 // pred_region
      %s15 = ssub.s32 16, 16
      %16 = vsyncadd [#allocation3], %s15
      %s18 = sshll.u32 [#allocation2], 4
      %s19 = int_to_ptr.vmem [resolvable:$true] %s18
      %21 = dma.hbm_to_vmem [thread:$0]  %s0, 16, %s19, [#allocation3]
    $region5: #{tpu_custom_call.1} parent=1 // pred_fallthru
      _
    // Predicated region
    $region6: #{tpu_custom_call.1} parent=1 // pred_check
      _
    $region7: #{tpu_custom_call.1} parent=1 // pred_check_branch
      %23 = sbr.rel (0) target = $region9
    $region8: #{tpu_custom_call.1} parent=1 // pred_region
      _
    $region9: #{tpu_custom_call.1} parent=1 // pred_fallthru
      _
    // Predicated region
    $region10: #{tpu_custom_call.1} parent=1 // pred_check
      _
    $region11: #{tpu_custom_call.1} parent=1 // pred_check_branch
      %25 = sbr.rel (0) target = $region13
    $region12: #{tpu_custom_call.1} parent=1 // pred_region
      %26 = dma.done [#allocation3], 16
    $region13: #{tpu_custom_call.1} parent=1 // pred_fallthru
      _
    %v27 = vlaneseq
    %v28 = vshrl.u32 %v27, 7
    %v29 = vcvt.s32.f32 %v28
    %v30 = vld [vmem:[#allocation2] sm:$0x1]
    %v32 = vlaneseq
    %v33 = vshrl.u32 %v32, 7
    %v34 = vsub.s32 0, %v33
    %v35 = vrot.slane %v30, %v34
    %v37 = vmul.f32 %v29, %v35
    %39 = vrot.lane.b32.xlu0 %v37, 16
    %v40 = vpop.permute.xlu0 %39
    %vm42 = vcmask 130048
    %v43 = vsel %vm42, %v37, %v40
    %vm44 = vcmask 261120
    %45 = vst.msk [vmem:[#allocation5] sm:$0xff] %vm44, %v43
    %v46 = vsub.f32 %v29, 4.0
    %v47 = vmul.f32 %v46, 0.001953125
    %v48 = vld [vmem:[%s1] sm:$0x1]
    %v49 = vlog2.pop %v48
    %v50 = vmul.f32 %v49, 0.6931472
    %v52 = vlaneseq
    %v53 = vshrl.u32 %v52, 7
    %v54 = vsub.s32 0, %v53
    %v55 = vrot.slane %v50, %v54
    %v57 = vmul.f32 %v47, %v55
    %v58 = vmul.f32 %v57, 1.442695
    %v59 = vpow.pop %v58
    %61 = vrot.lane.b32.xlu0 %v59, 16
    %v62 = vpop.permute.xlu0 %61
    %v64 = vsel %vm42, %v59, %v62
    %65 = vst.msk [vmem:[#allocation6] sm:$0xff] %vm44, %v64
    // Predicated region
    $region14: #{tpu_custom_call.1} parent=1 // pred_check
      _
    $region15: #{tpu_custom_call.1} parent=1 // pred_check_branch
      %67 = sbr.rel (0) target = $region17
    $region16: #{tpu_custom_call.1} parent=1 // pred_region
      %s69 = ssub.s32 128, 128
      %70 = vsyncadd [#allocation4], %s69
      %s72 = sshll.u32 [#allocation5], 4
      %s73 = int_to_ptr.vmem [resolvable:$true] %s72
      %75 = dma.vmem_to_hbm [thread:$0]  %s73, 128, %s2, [#allocation4]
    $region17: #{tpu_custom_call.1} parent=1 // pred_fallthru
      _
    // Predicated region
    $region18: #{tpu_custom_call.1} parent=1 // pred_check
      _
    $region19: #{tpu_custom_call.1} parent=1 // pred_check_branch
      %77 = sbr.rel (0) target = $region21
    $region20: #{tpu_custom_call.1} parent=1 // pred_region
      %s79 = ssub.s32 128, 128
      %80 = vsyncadd [#allocation7], %s79
      %s82 = sshll.u32 [#allocation6], 4
      %s83 = int_to_ptr.vmem [resolvable:$true] %s82
      %85 = dma.vmem_to_hbm [thread:$0]  %s83, 128, %s3, [#allocation7]
    $region21: #{tpu_custom_call.1} parent=1 // pred_fallthru
      _
    // Predicated region
    $region22: #{tpu_custom_call.1} parent=1 // pred_check
      _
    $region23: #{tpu_custom_call.1} parent=1 // pred_check_branch
      %87 = sbr.rel (0) target = $region25
    $region24: #{tpu_custom_call.1} parent=1 // pred_region
      %88 = dma.done [#allocation4], 128
    $region25: #{tpu_custom_call.1} parent=1 // pred_fallthru
      _
    // Predicated region
    $region26: #{tpu_custom_call.1} parent=1 // pred_check
      _
    $region27: #{tpu_custom_call.1} parent=1 // pred_check_branch
      %90 = sbr.rel (0) target = $region29
    $region28: #{tpu_custom_call.1} parent=1 // pred_region
      %91 = dma.done [#allocation7], 128
    $region29: #{tpu_custom_call.1} parent=1 // pred_fallthru
      _
    %92 = vsyncpa [#allocation3], 1
    %93 = vsyncpa [#allocation4], 1
    %94 = vsyncpa [#allocation7], 1

</llo_original>
